<compile_context>
chip_gen: v6e
topology: v6e:2x2x1
jax: 0.10.0
libtpu: 0.0.40
codegen_flags: <defaults>
</compile_context>

<pallas_src>
import functools

import numpy as np
import jax
import jax.numpy as jnp
from jax.experimental import pallas as pl
from jax.experimental.pallas import tpu as pltpu

N_CLASSES = 6
SMOOTH = 1e-5


def _round_up(x, m):
    return ((x + m - 1) // m) * m


def _cdiv(a, b):
    return (a + b - 1) // b


def _largest_divisor_leq(n, k):
    for d in range(max(1, min(n, k)), 0, -1):
        if n % d == 0:
            return d
    return 1


def _dice_sums_kernel(x_ref, t_ref, int_ref, y_ref, z_ref, *,
                      apply_softmax, needs_mask, hw):
    """Accumulate per-class sums (intersect, y_sum, z_sum) over the grid.

    Grid = (batch_block [arbitrary], pixel_tile [arbitrary]).
    Outputs are resident (1, C, 1) accumulators (same block every step).
    """
    b = pl.program_id(0)
    i = pl.program_id(1)

    @pl.when(jnp.logical_and(b == 0, i == 0))
    def _():
        zeros = jnp.zeros(int_ref.shape, int_ref.dtype)
        int_ref[...] = zeros
        y_ref[...] = zeros
        z_ref[...] = zeros

    x = x_ref[...].astype(jnp.float32)      # (bn, C, T), upcast after DMA (bf16 ok)
    t = t_ref[...]                          # (bn, 1, T) int32 labels
    n_cls = x.shape[1]
    tile_w = x.shape[2]

    if apply_softmax:
        m = jnp.max(x, axis=1, keepdims=True)        # softmax over channel axis
        e = jnp.exp(x - m)
        denom = jnp.sum(e, axis=1, keepdims=True)    # in [1, C], no overflow
        inv0 = pl.reciprocal(denom, approx=True)     # EUP vrcp slot
        inv = inv0 * (2.0 - denom * inv0)            # one Newton step, ~1e-7 rel err
        s = e * inv
    else:
        s = x

    # 1-vreg class-id comparand; broadcast compare against labels -> one-hot.
    cls = jax.lax.broadcasted_iota(jnp.int32, (1, n_cls, 1), 1)
    onehot = (t == cls).astype(jnp.float32)          # (bn, C, T)

    def accumulate(s_v, oh_v):
        def col_sum(v):                              # (bn, C, T) -> (1, C, 1)
            r = jnp.sum(v, axis=2, keepdims=True)
            return jnp.sum(r, axis=0, keepdims=True)
        int_ref[...] += col_sum(s_v * oh_v)          # intersect
        y_ref[...] += col_sum(oh_v)                  # y_sum (t*t == t for one-hot)
        z_ref[...] += col_sum(s_v * s_v)             # z_sum

    if needs_mask:
        last = pl.num_programs(1) - 1

        @pl.when(i < last)
        def _():
            accumulate(s, onehot)                    # unmasked hot path

        @pl.when(i == last)
        def _():
            # Only the last pixel tile covers columns past HW.  Select (not
            # multiply) after softmax so garbage columns (NaN/Inf) are dropped.
            col = jax.lax.broadcasted_iota(jnp.int32, (1, 1, tile_w), 2)
            valid = (i * tile_w + col) < hw
            accumulate(jnp.where(valid, s, 0.0), jnp.where(valid, onehot, 0.0))
    else:
        accumulate(s, onehot)


def dice_loss(inputs, target, weight=None, softmax=True, *,
              tile=65536, x_buffers=2):
    """inputs: (N, C, H, W) float logits (f32 or bf16); target: (N, H, W) ints."""
    N, C, H, W = inputs.shape
    assert C == N_CLASSES, "DiceLoss forward is hard-coded over 6 classes"
    HW = H * W

    # Free reshapes only: no HBM transpose, no dtype copy.
    x = inputs.reshape(N, C, HW)
    t = target.reshape(N, 1, HW).astype(jnp.int32)

    # Lane budget per grid step (multiple of 128).
    max_lanes = max(128, _round_up(int(tile), 128))
    hw_pad = _round_up(HW, 128)

    if hw_pad <= max_lanes:
        # Small image: one block covers the full pixel range of bn images,
        # amortizing the per-step pipeline overhead across the batch.
        bn = _largest_divisor_leq(N, max(1, max_lanes // hw_pad))
        nb = N // bn
        tile_w = HW                 # full last dim -> no padding, no mask
        nt = 1
        needs_mask = False
    else:
        # Large image: one image per block, big lane tiles over the pixels.
        bn = 1
        nb = N
        tile_w = max_lanes
        nt = _cdiv(HW, tile_w)
        needs_mask = (HW % tile_w) != 0

    kernel = functools.partial(
        _dice_sums_kernel,
        apply_softmax=bool(softmax),
        needs_mask=needs_mask,
        hw=HW)

    x_spec_kwargs = {}
    if x_buffers != 2:
        # e.g. v5e with exposed DMA at large tiles: deeper input buffering.
        x_spec_kwargs["pipeline_mode"] = pl.Buffered(int(x_buffers))

    acc_shape = jax.ShapeDtypeStruct((1, C, 1), jnp.float32)
    acc_spec = pl.BlockSpec((1, C, 1), lambda b, i: (0, 0, 0))

    intersect, y_sum, z_sum = pl.pallas_call(
        kernel,
        out_shape=(acc_shape, acc_shape, acc_shape),
        grid_spec=pltpu.PrefetchScalarGridSpec(
            num_scalar_prefetch=0,
            grid=(nb, nt),
            in_specs=[
                pl.BlockSpec((bn, C, tile_w), lambda b, i: (b, 0, i),
                             **x_spec_kwargs),
                pl.BlockSpec((bn, 1, tile_w), lambda b, i: (b, 0, i)),
            ],
            out_specs=(acc_spec, acc_spec, acc_spec),
        ),
        compiler_params=pltpu.CompilerParams(
            dimension_semantics=("arbitrary", "arbitrary"),
            vmem_limit_bytes=32 * 1024 * 1024),
    )(x, t)

    # Dice formula + class weights in plain JAX (weights never enter the kernel).
    intersect = intersect[0, :, 0]          # (C,)
    y_sum = y_sum[0, :, 0]
    z_sum = z_sum[0, :, 0]
    dice = 1.0 - (2.0 * intersect + SMOOTH) / (z_sum + y_sum + SMOOTH)

    if weight is None:
        weight = [1.0] * N_CLASSES
    w = jnp.asarray(weight, jnp.float32)
    return jnp.sum(dice * w) / 6.0


def _reference(inputs, target, weight=None, softmax=True):
    """Pure-JAX reference mirroring the PyTorch module."""
    x = inputs.astype(jnp.float32)
    s = jax.nn.softmax(x, axis=1) if softmax else x
    if weight is None:
        weight = [1.0] * N_CLASSES
    loss = 0.0
    for i in range(6):
        t = (target == i).astype(jnp.float32)
        sc = s[:, i]
        intersect = jnp.sum(sc * t)
        y_sum = jnp.sum(t * t)
        z_sum = jnp.sum(sc * sc)
        dice = 1.0 - (2.0 * intersect + SMOOTH) / (z_sum + y_sum + SMOOTH)
        loss = loss + dice * weight[i]
    return loss / 6.0


if __name__ == "__main__":
    key = jax.random.PRNGKey(0)
    k_x, k_t, k_x2, k_t2 = jax.random.split(key, 4)

    # 1) f32 logits, small image -> batch-folded single-step path (bn=2, nt=1).
    N, C, H, W = 2, N_CLASSES, 16, 16
    inputs = jax.random.normal(k_x, (N, C, H, W), dtype=jnp.float32)
    target = jax.random.randint(k_t, (N, H, W), 0, N_CLASSES, dtype=jnp.int32)
    loss = jax.block_until_ready(dice_loss(inputs, target))
    ref = jax.block_until_ready(_reference(inputs, target))
    np.testing.assert_allclose(np.asarray(loss), np.asarray(ref),
                               rtol=1e-5, atol=1e-6)

    # 2) bf16 logits, tiny tile -> multi pixel-tile path (no tail mask needed).
    inputs_bf16 = inputs.astype(jnp.bfloat16)
    loss_bf16 = jax.block_until_ready(dice_loss(inputs_bf16, target, tile=128))
    ref_bf16 = jax.block_until_ready(
        _reference(inputs_bf16.astype(jnp.float32), target))
    np.testing.assert_allclose(np.asarray(loss_bf16), np.asarray(ref_bf16),
                               rtol=1e-5, atol=1e-5)

    # 3) non-multiple-of-128 image + tiny tile -> masked last-tile branch,
    #    plus non-uniform class weights.
    N2, H2, W2 = 1, 15, 20
    inputs2 = jax.random.normal(k_x2, (N2, C, H2, W2), dtype=jnp.float32)
    target2 = jax.random.randint(k_t2, (N2, H2, W2), 0, N_CLASSES, dtype=jnp.int32)
    wts = [0.5, 1.0, 1.5, 2.0, 0.3, 0.7]
    loss2 = jax.block_until_ready(dice_loss(inputs2, target2, weight=wts, tile=128))
    ref2 = jax.block_until_ready(_reference(inputs2, target2, weight=wts))
    np.testing.assert_allclose(np.asarray(loss2), np.asarray(ref2),
                               rtol=1e-5, atol=1e-6)

    print("KERNEL_OK")
</pallas_src>

<mosaic_0001>
module attributes {stable_mosaic.version = 11 : i64} {
  func.func @_dice_sums_kernel(%arg0: i32, %arg1: i32, %arg2: memref<2x6x256xf32, #tpu.memory_space<vmem>>, %arg3: memref<2x1x256xi32, #tpu.memory_space<vmem>>, %arg4: memref<1x6x1xf32, #tpu.memory_space<vmem>>, %arg5: memref<1x6x1xf32, #tpu.memory_space<vmem>>, %arg6: memref<1x6x1xf32, #tpu.memory_space<vmem>>) attributes {dimension_semantics = [#tpu.dimension_semantics<arbitrary>, #tpu.dimension_semantics<arbitrary>], iteration_bounds = array<i64: 1, 1>, scalar_prefetch = 0 : i64, scratch_operands = 0 : i64, tpu.core_type = #tpu.core_type<tc>, window_params = [{transform_indices = @transform_0, window_bounds = array<i64: 2, 6, 256>}, {transform_indices = @transform_1, window_bounds = array<i64: 2, 1, 256>}, {pipeline_mode = #tpu.pipeline_mode<synchronous>, transform_indices = @transform_2, window_bounds = array<i64: 1, 6, 1>}, {pipeline_mode = #tpu.pipeline_mode<synchronous>, transform_indices = @transform_3, window_bounds = array<i64: 1, 6, 1>}, {pipeline_mode = #tpu.pipeline_mode<synchronous>, transform_indices = @transform_4, window_bounds = array<i64: 1, 6, 1>}]} {
    %c0_i32 = arith.constant 0 : i32
    %0 = arith.cmpi eq, %arg0, %c0_i32 : i32
    %c0_i32_0 = arith.constant 0 : i32
    %1 = arith.cmpi eq, %arg1, %c0_i32_0 : i32
    %2 = arith.andi %0, %1 : i1
    %3 = arith.extui %2 : i1 to i32
    %c0_i32_1 = arith.constant 0 : i32
    %4 = arith.cmpi ne, %3, %c0_i32_1 : i32
    scf.if %4 {
      %cst_33 = arith.constant 0.000000e+00 : f32
      %50 = vector.broadcast %cst_33 : f32 to vector<1x6x1xf32>
      %c0_34 = arith.constant 0 : index
      %c0_35 = arith.constant 0 : index
      %c0_36 = arith.constant 0 : index
      %51 = vector.load %arg4[%c0_34, %c0_35, %c0_36] : memref<1x6x1xf32, #tpu.memory_space<vmem>>, vector<1x6x1xf32>
      tpu.vector_store %arg4[%c0_34, %c0_35, %c0_36], %50 {strides = array<i32>} : memref<1x6x1xf32, #tpu.memory_space<vmem>>, vector<1x6x1xf32>,
      %c0_37 = arith.constant 0 : index
      %c0_38 = arith.constant 0 : index
      %c0_39 = arith.constant 0 : index
      %52 = vector.load %arg5[%c0_37, %c0_38, %c0_39] : memref<1x6x1xf32, #tpu.memory_space<vmem>>, vector<1x6x1xf32>
      tpu.vector_store %arg5[%c0_37, %c0_38, %c0_39], %50 {strides = array<i32>} : memref<1x6x1xf32, #tpu.memory_space<vmem>>, vector<1x6x1xf32>,
      %c0_40 = arith.constant 0 : index
      %c0_41 = arith.constant 0 : index
      %c0_42 = arith.constant 0 : index
      %53 = vector.load %arg6[%c0_40, %c0_41, %c0_42] : memref<1x6x1xf32, #tpu.memory_space<vmem>>, vector<1x6x1xf32>
      tpu.vector_store %arg6[%c0_40, %c0_41, %c0_42], %50 {strides = array<i32>} : memref<1x6x1xf32, #tpu.memory_space<vmem>>, vector<1x6x1xf32>,
    } else {
    }
    %c0 = arith.constant 0 : index
    %c0_2 = arith.constant 0 : index
    %c0_3 = arith.constant 0 : index
    %5 = vector.load %arg2[%c0, %c0_2, %c0_3] : memref<2x6x256xf32, #tpu.memory_space<vmem>>, vector<2x6x256xf32>
    %c0_4 = arith.constant 0 : index
    %c0_5 = arith.constant 0 : index
    %c0_6 = arith.constant 0 : index
    %6 = vector.load %arg3[%c0_4, %c0_5, %c0_6] : memref<2x1x256xi32, #tpu.memory_space<vmem>>, vector<2x1x256xi32>
    %cst = arith.constant dense<0xFF800000> : vector<2x256xf32>
    %7 = vector.multi_reduction <maximumf>, %5, %cst [1] : vector<2x6x256xf32> to vector<2x256xf32>
    %8 = vector.shape_cast %7 : vector<2x256xf32> to vector<2x1x256xf32>
    %9 = vector.broadcast %8 : vector<2x1x256xf32> to vector<2x6x256xf32>
    %10 = arith.subf %5, %9 : vector<2x6x256xf32>
    %11 = math.exp %10 : vector<2x6x256xf32>
    %cst_7 = arith.constant dense<0.000000e+00> : vector<2x256xf32>
    %12 = vector.multi_reduction <add>, %11, %cst_7 [1] : vector<2x6x256xf32> to vector<2x256xf32>
    %13 = vector.shape_cast %12 : vector<2x256xf32> to vector<2x1x256xf32>
    %14 = tpu.reciprocal %13 {approx = true} : vector<2x1x256xf32> -> vector<2x1x256xf32>
    %15 = arith.mulf %13, %14 : vector<2x1x256xf32>
    %cst_8 = arith.constant 2.000000e+00 : f32
    %16 = vector.broadcast %cst_8 : f32 to vector<2x1x256xf32>
    %17 = arith.subf %16, %15 : vector<2x1x256xf32>
    %18 = arith.mulf %14, %17 : vector<2x1x256xf32>
    %19 = vector.broadcast %18 : vector<2x1x256xf32> to vector<2x6x256xf32>
    %20 = arith.mulf %11, %19 : vector<2x6x256xf32>
    %21 = tpu.iota {dimensions = array<i32: 1>} : vector<1x6x1xi32>
    %22 = vector.broadcast %6 : vector<2x1x256xi32> to vector<2x6x256xi32>
    %23 = vector.broadcast %21 : vector<1x6x1xi32> to vector<2x6x256xi32>
    %24 = arith.cmpi eq, %22, %23 : vector<2x6x256xi32>
    %25 = arith.extui %24 : vector<2x6x256xi1> to vector<2x6x256xi32>
    %26 = arith.sitofp %25 : vector<2x6x256xi32> to vector<2x6x256xf32>
    %c0_9 = arith.constant 0 : index
    %c0_10 = arith.constant 0 : index
    %c0_11 = arith.constant 0 : index
    %27 = vector.load %arg4[%c0_9, %c0_10, %c0_11] : memref<1x6x1xf32, #tpu.memory_space<vmem>>, vector<1x6x1xf32>
    %28 = arith.mulf %20, %26 : vector<2x6x256xf32>
    %cst_12 = arith.constant dense<0.000000e+00> : vector<2x6xf32>
    %29 = vector.multi_reduction <add>, %28, %cst_12 [2] : vector<2x6x256xf32> to vector<2x6xf32>
    %30 = vector.shape_cast %29 : vector<2x6xf32> to vector<2x6x1xf32>
    %cst_13 = arith.constant dense<0.000000e+00> : vector<6x1xf32>
    %31 = vector.multi_reduction <add>, %30, %cst_13 [0] : vector<2x6x1xf32> to vector<6x1xf32>
    %32 = vector.shape_cast %31 : vector<6x1xf32> to vector<1x6x1xf32>
    %33 = arith.addf %27, %32 : vector<1x6x1xf32>
    %c0_14 = arith.constant 0 : index
    %c0_15 = arith.constant 0 : index
    %c0_16 = arith.constant 0 : index
    %34 = vector.load %arg4[%c0_14, %c0_15, %c0_16] : memref<1x6x1xf32, #tpu.memory_space<vmem>>, vector<1x6x1xf32>
    tpu.vector_store %arg4[%c0_14, %c0_15, %c0_16], %33 {strides = array<i32>} : memref<1x6x1xf32, #tpu.memory_space<vmem>>, vector<1x6x1xf32>,
    %c0_17 = arith.constant 0 : index
    %c0_18 = arith.constant 0 : index
    %c0_19 = arith.constant 0 : index
    %35 = vector.load %arg5[%c0_17, %c0_18, %c0_19] : memref<1x6x1xf32, #tpu.memory_space<vmem>>, vector<1x6x1xf32>
    %cst_20 = arith.constant dense<0.000000e+00> : vector<2x6xf32>
    %36 = vector.multi_reduction <add>, %26, %cst_20 [2] : vector<2x6x256xf32> to vector<2x6xf32>
    %37 = vector.shape_cast %36 : vector<2x6xf32> to vector<2x6x1xf32>
    %cst_21 = arith.constant dense<0.000000e+00> : vector<6x1xf32>
    %38 = vector.multi_reduction <add>, %37, %cst_21 [0] : vector<2x6x1xf32> to vector<6x1xf32>
    %39 = vector.shape_cast %38 : vector<6x1xf32> to vector<1x6x1xf32>
    %40 = arith.addf %35, %39 : vector<1x6x1xf32>
    %c0_22 = arith.constant 0 : index
    %c0_23 = arith.constant 0 : index
    %c0_24 = arith.constant 0 : index
    %41 = vector.load %arg5[%c0_22, %c0_23, %c0_24] : memref<1x6x1xf32, #tpu.memory_space<vmem>>, vector<1x6x1xf32>
    tpu.vector_store %arg5[%c0_22, %c0_23, %c0_24], %40 {strides = array<i32>} : memref<1x6x1xf32, #tpu.memory_space<vmem>>, vector<1x6x1xf32>,
    %c0_25 = arith.constant 0 : index
    %c0_26 = arith.constant 0 : index
    %c0_27 = arith.constant 0 : index
    %42 = vector.load %arg6[%c0_25, %c0_26, %c0_27] : memref<1x6x1xf32, #tpu.memory_space<vmem>>, vector<1x6x1xf32>
    %43 = arith.mulf %20, %20 : vector<2x6x256xf32>
    %cst_28 = arith.constant dense<0.000000e+00> : vector<2x6xf32>
    %44 = vector.multi_reduction <add>, %43, %cst_28 [2] : vector<2x6x256xf32> to vector<2x6xf32>
    %45 = vector.shape_cast %44 : vector<2x6xf32> to vector<2x6x1xf32>
    %cst_29 = arith.constant dense<0.000000e+00> : vector<6x1xf32>
    %46 = vector.multi_reduction <add>, %45, %cst_29 [0] : vector<2x6x1xf32> to vector<6x1xf32>
    %47 = vector.shape_cast %46 : vector<6x1xf32> to vector<1x6x1xf32>
    %48 = arith.addf %42, %47 : vector<1x6x1xf32>
    %c0_30 = arith.constant 0 : index
    %c0_31 = arith.constant 0 : index
    %c0_32 = arith.constant 0 : index
    %49 = vector.load %arg6[%c0_30, %c0_31, %c0_32] : memref<1x6x1xf32, #tpu.memory_space<vmem>>, vector<1x6x1xf32>
    tpu.vector_store %arg6[%c0_30, %c0_31, %c0_32], %48 {strides = array<i32>} : memref<1x6x1xf32, #tpu.memory_space<vmem>>, vector<1x6x1xf32>,
    return
  }
  func.func @transform_0(%arg0: i32, %arg1: i32) -> (i32, i32, i32) {
    %c0_i32 = arith.constant 0 : i32
    %c0_i32_0 = arith.constant 0 : i32
    return %arg0, %c0_i32, %arg1 : i32, i32, i32
  }
  func.func @transform_1(%arg0: i32, %arg1: i32) -> (i32, i32, i32) {
    %c0_i32 = arith.constant 0 : i32
    %c0_i32_0 = arith.constant 0 : i32
    return %arg0, %c0_i32, %arg1 : i32, i32, i32
  }
  func.func @transform_2(%arg0: i32, %arg1: i32) -> (i32, i32, i32) {
    %c0_i32 = arith.constant 0 : i32
    %c0_i32_0 = arith.constant 0 : i32
    %c0_i32_1 = arith.constant 0 : i32
    %c0_i32_2 = arith.constant 0 : i32
    return %c0_i32, %c0_i32_0, %c0_i32_1 : i32, i32, i32
  }
  func.func @transform_3(%arg0: i32, %arg1: i32) -> (i32, i32, i32) {
    %c0_i32 = arith.constant 0 : i32
    %c0_i32_0 = arith.constant 0 : i32
    %c0_i32_1 = arith.constant 0 : i32
    %c0_i32_2 = arith.constant 0 : i32
    return %c0_i32, %c0_i32_0, %c0_i32_1 : i32, i32, i32
  }
  func.func @transform_4(%arg0: i32, %arg1: i32) -> (i32, i32, i32) {
    %c0_i32 = arith.constant 0 : i32
    %c0_i32_0 = arith.constant 0 : i32
    %c0_i32_1 = arith.constant 0 : i32
    %c0_i32_2 = arith.constant 0 : i32
    return %c0_i32, %c0_i32_0, %c0_i32_1 : i32, i32, i32
  }
}

</mosaic_0001>

<llo_original>
// kernel: tpu_custom_call.1
$region0: #{tpu_custom_call.1}
  #allocation0 [shape = 'u32[]', space=smem, size = 0x4, offset = 0x4, fixed_abs, tag = 'smem constant byte address 0x4 - core index']
  #allocation1 [shape = 'u32[144,128]{1,0:T(1,128)}', space=vmem, size = 0x12000, scoped, tag = 'internal scratch']
  %s0 = inlined_call_operand.vmem [shape: f32[2,6,256], index: 0, kind: input, shape index: {}]
  %s1 = inlined_call_operand.vmem [shape: s32[2,1,256], index: 1, kind: input, shape index: {}]
  %s2 = inlined_call_operand.vmem [shape: f32[1,6,1], index: 2, kind: output, shape index: {0}]
  %s3 = inlined_call_operand.vmem [shape: f32[1,6,1], index: 3, kind: output, shape index: {1}]
  %s4 = inlined_call_operand.vmem [shape: f32[1,6,1], index: 4, kind: output, shape index: {2}]
  %5 = xla_tuple %s2, %s3, %s4
  %s6 = sld [smem:[#allocation0]]
  $region38: #{tpu_custom_call.1} parent=0
    _
  %s8 = ssub.s32 1, %s6
  %s9 = scalar_select 0, %s8, %s6
  // Predicated region
  $region2: #{tpu_custom_call.1} parent=0 // pred_check
    _
  $region3: #{tpu_custom_call.1} parent=0 // pred_check_branch
    %11 = sbr.rel (0) target = $region5
  $region4: #{tpu_custom_call.1} parent=0 // pred_region
    _
  $region5: #{tpu_custom_call.1} parent=0 // pred_fallthru
    _
  // Predicated region
  $region6: #{tpu_custom_call.1} parent=0 // pred_check
    _
  $region7: #{tpu_custom_call.1} parent=0 // pred_check_branch
    %13 = sbr.rel (0) target = $region9
  $region8: #{tpu_custom_call.1} parent=0 // pred_region
    _
  $region9: #{tpu_custom_call.1} parent=0 // pred_fallthru
    _
  %p14 = scmp.eq.s32.totalorder 0, 0
  %p15 = scmp.eq.s32.totalorder 0, 0
  %p16 = pnand %p14, %p15
  %p17 = pneg %p16
  // Predicated region
  $region10: #{tpu_custom_call.1} parent=0 // pred_check
    _
  $region11: #{tpu_custom_call.1} parent=0 // pred_check_branch
    %19 = sbr.rel (%p16) target = $region13
  $region12: #{tpu_custom_call.1} parent=0 // pred_region
    %vm20 = vcmask 5120
    %21 = vst.msk [vmem:[%s2] sm:$0x3f] %vm20, 0.0
    %22 = vst.msk [vmem:[%s3] sm:$0x3f] %vm20, 0.0
    %23 = vst.msk [vmem:[%s4] sm:$0x3f] %vm20, 0.0
  $region13: #{tpu_custom_call.1} parent=0 // pred_fallthru
    _
  %v24 = vld [vmem:[%s0] sm:$0x3f]
  %v25 = vld [vmem:[%s0 + $0x8] sm:$0x3f]
  %v26 = vld [vmem:[%s0 + $0x10] sm:$0x3f]
  %v27 = vld [vmem:[%s0 + $0x18] sm:$0x3f]
  %v28 = vld [vmem:[%s1] sm:$0x3]
  %v29 = vld [vmem:[%s1 + $0x2] sm:$0x3]
  %vm30 = vcmask 1045504
  %v31 = vsel %vm30, %v24, -inf
  %v32 = vrot.slane %v31, 4
  %v33 = vmax.f32 %v31, %v32
  %v34 = vrot.slane %v33, 2
  %v35 = vmax.f32 %v33, %v34
  %v36 = vrot.slane %v35, 1
  %v37 = vmax.f32 %v35, %v36
  %v38 = vsel %vm30, %v25, -inf
  %v39 = vrot.slane %v38, 4
  %v40 = vmax.f32 %v38, %v39
  %v41 = vrot.slane %v40, 2
  %v42 = vmax.f32 %v40, %v41
  %v43 = vrot.slane %v42, 1
  %v44 = vmax.f32 %v42, %v43
  %v45 = vsel %vm30, %v26, -inf
  %v46 = vrot.slane %v45, 4
  %v47 = vmax.f32 %v45, %v46
  %v48 = vrot.slane %v47, 2
  %v49 = vmax.f32 %v47, %v48
  %v50 = vrot.slane %v49, 1
  %v51 = vmax.f32 %v49, %v50
  %v52 = vsel %vm30, %v27, -inf
  %v53 = vrot.slane %v52, 4
  %v54 = vmax.f32 %v52, %v53
  %v55 = vrot.slane %v54, 2
  %v56 = vmax.f32 %v54, %v55
  %v57 = vrot.slane %v56, 1
  %v58 = vmax.f32 %v56, %v57
  %v59 = vsub.f32 %v24, %v37
  %v60 = vsub.f32 %v25, %v44
  %v61 = vsub.f32 %v26, %v51
  %v62 = vsub.f32 %v27, %v58
  %v63 = vmul.f32 %v59, 1.442695
  %v64 = vpow.pop %v63
  %v65 = vmul.f32 %v60, 1.442695
  %v66 = vpow.pop %v65
  %v67 = vmul.f32 %v61, 1.442695
  %v68 = vpow.pop %v67
  %v69 = vmul.f32 %v62, 1.442695
  %v70 = vpow.pop %v69
  %v71 = vsel %vm30, %v64, 0.0
  %v72 = vrot.slane %v71, 4
  %v73 = vadd.f32 %v71, %v72
  %v74 = vrot.slane %v73, 2
  %v75 = vadd.f32 %v73, %v74
  %v76 = vrot.slane %v75, 1
  %v77 = vadd.f32 %v75, %v76
  %v78 = vsel %vm30, %v66, 0.0
  %v79 = vrot.slane %v78, 4
  %v80 = vadd.f32 %v78, %v79
  %v81 = vrot.slane %v80, 2
  %v82 = vadd.f32 %v80, %v81
  %v83 = vrot.slane %v82, 1
  %v84 = vadd.f32 %v82, %v83
  %v85 = vsel %vm30, %v68, 0.0
  %v86 = vrot.slane %v85, 4
  %v87 = vadd.f32 %v85, %v86
  %v88 = vrot.slane %v87, 2
  %v89 = vadd.f32 %v87, %v88
  %v90 = vrot.slane %v89, 1
  %v91 = vadd.f32 %v89, %v90
  %v92 = vsel %vm30, %v70, 0.0
  %v93 = vrot.slane %v92, 4
  %v94 = vadd.f32 %v92, %v93
  %v95 = vrot.slane %v94, 2
  %v96 = vadd.f32 %v94, %v95
  %v97 = vrot.slane %v96, 1
  %v98 = vadd.f32 %v96, %v97
  %v99 = vrcp.pop %v77
  %v100 = vrcp.pop %v84
  %v101 = vrcp.pop %v91
  %v102 = vrcp.pop %v98
  %v103 = vmul.f32 %v77, %v99
  %v104 = vmul.f32 %v84, %v100
  %v105 = vmul.f32 %v91, %v101
  %v106 = vmul.f32 %v98, %v102
  %v107 = vsub.f32 2.0, %v103
  %v108 = vsub.f32 2.0, %v104
  %v109 = vsub.f32 2.0, %v105
  %v110 = vsub.f32 2.0, %v106
  %v111 = vmul.f32 %v99, %v107
  %v112 = vmul.f32 %v100, %v108
  %v113 = vmul.f32 %v101, %v109
  %v114 = vmul.f32 %v102, %v110
  %v115 = vmul.f32 %v64, %v111
  %v116 = vmul.f32 %v66, %v112
  %v117 = vmul.f32 %v68, %v113
  %v118 = vmul.f32 %v70, %v114
  %v119 = vlaneseq
  %v120 = vshrl.u32 %v119, 7
  %v121 = vlaneseq
  %v122 = vshrl.u32 %v121, 7
  %v123 = vsub.s32 0, %v122
  %v124 = vrot.slane %v28, %v123
  %v125 = vlaneseq
  %v126 = vshrl.u32 %v125, 7
  %v127 = vsub.s32 1, %v126
  %v128 = vrot.slane %v28, %v127
  %v129 = vlaneseq
  %v130 = vshrl.u32 %v129, 7
  %v131 = vsub.s32 0, %v130
  %v132 = vrot.slane %v29, %v131
  %v133 = vlaneseq
  %v134 = vshrl.u32 %v133, 7
  %v135 = vsub.s32 1, %v134
  %v136 = vrot.slane %v29, %v135
  %vm137 = vcmp.eq.s32.totalorder %v124, %v120
  %vm138 = vcmp.eq.s32.totalorder %v128, %v120
  %vm139 = vcmp.eq.s32.totalorder %v132, %v120
  %vm140 = vcmp.eq.s32.totalorder %v136, %v120
  %v141 = vsel %vm137, 1, 0
  %v142 = vsel %vm138, 1, 0
  %v143 = vsel %vm139, 1, 0
  %v144 = vsel %vm140, 1, 0
  %v145 = vcvt.s32.f32 %v141
  %v146 = vcvt.s32.f32 %v142
  %v147 = vcvt.s32.f32 %v143
  %v148 = vcvt.s32.f32 %v144
  %v149 = vld [vmem:[%s2] sm:$0x3f]
  %v150 = vmul.f32 %v115, %v145
  %v151 = vmul.f32 %v116, %v146
  %v152 = vmul.f32 %v117, %v147
  %v153 = vmul.f32 %v118, %v148
  %v154 = vsel %vm30, %v150, 0.0
  %v155 = vsel %vm30, %v151, 0.0
  %v156 = vadd.f32 %v154, %v155
  %157 = vadd.xlane.f32.xlu0 %v156
  %v158 = vpop.xlane.xlu0 %157
  %v159 = vsel %vm30, %v152, 0.0
  %v160 = vsel %vm30, %v153, 0.0
  %v161 = vadd.f32 %v159, %v160
  %162 = vadd.xlane.f32.xlu0 %v161
  %v163 = vpop.xlane.xlu0 %162
  %v164 = vsel %vm30, %v158, 0.0
  %v165 = vsel %vm30, %v163, 0.0
  %v166 = vadd.f32 %v164, %v165
  %v167 = vadd.f32 %v149, %v166
  %vm168 = vcmask 5120
  %169 = vst.msk [vmem:[%s2] sm:$0x3f] %vm168, %v167
  %v170 = vld [vmem:[%s3] sm:$0x3f]
  %v171 = vsel %vm30, %v145, 0.0
  %v172 = vsel %vm30, %v146, 0.0
  %v173 = vadd.f32 %v171, %v172
  %174 = vadd.xlane.f32.xlu0 %v173
  %v175 = vpop.xlane.xlu0 %174
  %v176 = vsel %vm30, %v147, 0.0
  %v177 = vsel %vm30, %v148, 0.0
  %v178 = vadd.f32 %v176, %v177
  %179 = vadd.xlane.f32.xlu0 %v178
  %v180 = vpop.xlane.xlu0 %179
  %v181 = vsel %vm30, %v175, 0.0
  %v182 = vsel %vm30, %v180, 0.0
  %v183 = vadd.f32 %v181, %v182
  %v184 = vadd.f32 %v170, %v183
  %185 = vst.msk [vmem:[%s3] sm:$0x3f] %vm168, %v184
  %v186 = vld [vmem:[%s4] sm:$0x3f]
  %v187 = vmul.f32 %v115, %v115
  %v188 = vmul.f32 %v116, %v116
  %v189 = vmul.f32 %v117, %v117
  %v190 = vmul.f32 %v118, %v118
  %v191 = vsel %vm30, %v187, 0.0
  %v192 = vsel %vm30, %v188, 0.0
  %v193 = vadd.f32 %v191, %v192
  %194 = vadd.xlane.f32.xlu0 %v193
  %v195 = vpop.xlane.xlu0 %194
  %v196 = vsel %vm30, %v189, 0.0
  %v197 = vsel %vm30, %v190, 0.0
  %v198 = vadd.f32 %v196, %v197
  %199 = vadd.xlane.f32.xlu0 %v198
  %v200 = vpop.xlane.xlu0 %199
  %v201 = vsel %vm30, %v195, 0.0
  %v202 = vsel %vm30, %v200, 0.0
  %v203 = vadd.f32 %v201, %v202
  %v204 = vadd.f32 %v186, %v203
  %205 = vst.msk [vmem:[%s4] sm:$0x3f] %vm168, %v204
  // Predicated region
  $region14: #{tpu_custom_call.1} parent=0 // pred_check
    _
  $region15: #{tpu_custom_call.1} parent=0 // pred_check_branch
    %207 = sbr.rel (0) target = $region17
  $region16: #{tpu_custom_call.1} parent=0 // pred_region
    _
  $region17: #{tpu_custom_call.1} parent=0 // pred_fallthru
    _
  // Predicated region
  $region18: #{tpu_custom_call.1} parent=0 // pred_check
    _
  $region19: #{tpu_custom_call.1} parent=0 // pred_check_branch
    %209 = sbr.rel (0) target = $region21
  $region20: #{tpu_custom_call.1} parent=0 // pred_region
    _
  $region21: #{tpu_custom_call.1} parent=0 // pred_fallthru
    _
  // Predicated region
  $region22: #{tpu_custom_call.1} parent=0 // pred_check
    _
  $region23: #{tpu_custom_call.1} parent=0 // pred_check_branch
    %211 = sbr.rel (0) target = $region25
  $region24: #{tpu_custom_call.1} parent=0 // pred_region
    _
  $region25: #{tpu_custom_call.1} parent=0 // pred_fallthru
    _
  // Predicated region
  $region26: #{tpu_custom_call.1} parent=0 // pred_check
    _
  $region27: #{tpu_custom_call.1} parent=0 // pred_check_branch
    %213 = sbr.rel (0) target = $region29
  $region28: #{tpu_custom_call.1} parent=0 // pred_region
    _
  $region29: #{tpu_custom_call.1} parent=0 // pred_fallthru
    _
  // Predicated region
  $region30: #{tpu_custom_call.1} parent=0 // pred_check
    _
  $region31: #{tpu_custom_call.1} parent=0 // pred_check_branch
    %215 = sbr.rel (0) target = $region33
  $region32: #{tpu_custom_call.1} parent=0 // pred_region
    _
  $region33: #{tpu_custom_call.1} parent=0 // pred_fallthru
    _
  // Predicated region
  $region34: #{tpu_custom_call.1} parent=0 // pred_check
    _
  $region35: #{tpu_custom_call.1} parent=0 // pred_check_branch
    %217 = sbr.rel (0) target = $region37
  $region36: #{tpu_custom_call.1} parent=0 // pred_region
    _
  $region37: #{tpu_custom_call.1} parent=0 // pred_fallthru
    _

</llo_original>
